<compile_context>
chip_gen: v7x
topology: tpu7x:2x2x1
jax: 0.10.0
libtpu: 0.0.40
codegen_flags: <defaults>
</compile_context>

<pallas_src>
import functools
import math

import jax
import jax.numpy as jnp
from jax import lax
from jax.experimental import pallas as pl
from jax.experimental.pallas import tpu as pltpu

_VMEM_LIMIT = 64 * 1024 * 1024


# ---------------------------------------------------------------------------
# helpers
# ---------------------------------------------------------------------------
def _pick_tile(dim, target, align):
    """Largest tile <= target that divides `dim` and is a multiple of `align`;
    otherwise the full dim (block == full array dim is always legal)."""
    if dim <= target:
        return dim
    t = (min(target, dim) // align) * align
    while t >= align:
        if dim % t == 0:
            return t
        t -= align
    return dim


# ---------------------------------------------------------------------------
# Tiled matmul kernels (qkv and out projections)
# ---------------------------------------------------------------------------
def _matmul_single_kernel(x_ref, w_ref, o_ref):
    o_ref[...] = jnp.dot(x_ref[...], w_ref[...],
                         preferred_element_type=jnp.float32).astype(o_ref.dtype)


def _matmul_acc_kernel(x_ref, w_ref, o_ref, acc_ref):
    @pl.when(pl.program_id(2) == 0)
    def _init():
        acc_ref[...] = jnp.zeros_like(acc_ref)

    acc_ref[...] += jnp.dot(x_ref[...], w_ref[...],
                            preferred_element_type=jnp.float32)

    @pl.when(pl.program_id(2) == pl.num_programs(2) - 1)
    def _store():
        o_ref[...] = acc_ref[...].astype(o_ref.dtype)


def pallas_matmul(x, w, *, tm_target=512, tn_target=512, tk_target=512):
    """x: (M, K) @ w: (K, N) -> (M, N) in x.dtype, f32 accumulation."""
    M, K = x.shape
    K2, N = w.shape
    assert K == K2
    tm = _pick_tile(M, tm_target, 8)      # sublane-aligned
    tn = _pick_tile(N, tn_target, 128)    # lane-aligned (or full N)

    if K <= 2048:
        # K fits one VMEM-resident step: drop the reduction grid axis entirely.
        return pl.pallas_call(
            _matmul_single_kernel,
            out_shape=jax.ShapeDtypeStruct((M, N), x.dtype),
            grid=(M // tm, N // tn),
            in_specs=[pl.BlockSpec((tm, K), lambda i, j: (i, 0)),
                      pl.BlockSpec((K, tn), lambda i, j: (0, j))],
            out_specs=pl.BlockSpec((tm, tn), lambda i, j: (i, j)),
            compiler_params=pltpu.CompilerParams(
                dimension_semantics=("parallel", "parallel"),
                vmem_limit_bytes=_VMEM_LIMIT),
        )(x, w)

    tk = _pick_tile(K, tk_target, 128)
    return pl.pallas_call(
        _matmul_acc_kernel,
        out_shape=jax.ShapeDtypeStruct((M, N), x.dtype),
        grid=(M // tm, N // tn, K // tk),
        in_specs=[pl.BlockSpec((tm, tk), lambda i, j, k: (i, k)),
                  pl.BlockSpec((tk, tn), lambda i, j, k: (k, j))],
        out_specs=pl.BlockSpec((tm, tn), lambda i, j, k: (i, j)),
        scratch_shapes=[pltpu.VMEM((tm, tn), jnp.float32)],
        compiler_params=pltpu.CompilerParams(
            dimension_semantics=("parallel", "parallel", "arbitrary"),
            vmem_limit_bytes=_VMEM_LIMIT),
    )(x, w)


# ---------------------------------------------------------------------------
# QKNorm + rearrange kernel: (B, N, 3, H, Dh) -> (3, B, H, N, Dh)
# (q RMS-normalized * q_scale * 1/sqrt(Dh), k RMS-normalized * k_scale, v copied)
# ---------------------------------------------------------------------------
def _qknorm_rearrange_kernel(x_ref, qs_ref, ks_ref, o_ref, *,
                             eps, attn_scale, n_heads):
    t = pl.program_id(1)                        # 0 = q, 1 = k, 2 = v
    x = x_ref[0, :, 0].astype(jnp.float32)      # (tn, H, Dh)
    inv = lax.rsqrt(jnp.mean(x * x, axis=-1, keepdims=True) + eps)   # (tn, H, 1)
    qs = qs_ref[...].reshape(1, 1, -1).astype(jnp.float32) * attn_scale
    ks = ks_ref[...].reshape(1, 1, -1).astype(jnp.float32)
    w = jnp.where(t == 0, qs, jnp.where(t == 1, ks, jnp.ones_like(qs)))
    factor = jnp.where(t == 2, jnp.ones_like(inv), inv)
    y = (x * factor * w).astype(o_ref.dtype)    # (tn, H, Dh)
    for h in range(n_heads):                    # per-head sublane-slice stores
        o_ref[0, 0, h] = y[:, h, :]


def pallas_qknorm_rearrange(qkv5, q_scale, k_scale, *, eps=1e-6, tile_target=256):
    B, N, three, H, Dh = qkv5.shape
    assert three == 3
    attn_scale = 1.0 / math.sqrt(Dh)
    tn = _pick_tile(N, tile_target, 8)
    kernel = functools.partial(_qknorm_rearrange_kernel, eps=eps,
                               attn_scale=attn_scale, n_heads=H)
    return pl.pallas_call(
        kernel,
        out_shape=jax.ShapeDtypeStruct((3, B, H, N, Dh), qkv5.dtype),
        grid=(B, 3, N // tn),
        in_specs=[pl.BlockSpec((1, tn, 1, H, Dh), lambda b, t, n: (b, n, t, 0, 0)),
                  pl.BlockSpec((1, Dh), lambda b, t, n: (0, 0)),
                  pl.BlockSpec((1, Dh), lambda b, t, n: (0, 0))],
        out_specs=pl.BlockSpec((1, 1, H, tn, Dh), lambda b, t, n: (t, b, 0, n, 0)),
        compiler_params=pltpu.CompilerParams(
            dimension_semantics=("parallel", "parallel", "parallel"),
            vmem_limit_bytes=_VMEM_LIMIT),
    )(qkv5, q_scale, k_scale)


# ---------------------------------------------------------------------------
# Flash attention kernel (online softmax, all heads per program)
# ---------------------------------------------------------------------------
def _flash_attn_kernel(q_ref, k_ref, v_ref, o_ref, m_ref, l_ref, acc_ref, *,
                       causal, tq, tkv, n_heads, d_head, kv_valid, mask_kv):
    qi = pl.program_id(1)
    ki = pl.program_id(2)

    @pl.when(ki == 0)
    def _init():
        m_ref[...] = jnp.full_like(m_ref, -jnp.inf)
        l_ref[...] = jnp.zeros_like(l_ref)
        acc_ref[...] = jnp.zeros_like(acc_ref)

    def _compute(on_diagonal):
        q = q_ref[0, 0]     # (H, tq, Dh), already RMS-normalized & 1/sqrt(Dh) scaled
        k = k_ref[0, 0]     # (H, tkv, Dh), already RMS-normalized
        v = v_ref[0, 0]     # (H, tkv, Dh)
        s = jnp.einsum('hqd,hkd->hqk', q, k,
                       preferred_element_type=jnp.float32)           # (H, tq, tkv)
        if mask_kv:
            col = lax.broadcasted_iota(jnp.int32, (1, 1, tkv), 2) + ki * tkv
            s = jnp.where(col < kv_valid, s, -1e30)
        if on_diagonal:
            # tq == tkv and same global offset => causal condition is local.
            row = lax.broadcasted_iota(jnp.int32, (1, tq, tkv), 1)
            col = lax.broadcasted_iota(jnp.int32, (1, tq, tkv), 2)
            s = jnp.where(col <= row, s, -1e30)

        m_prev = m_ref[...]
        m_new = jnp.maximum(m_prev, jnp.max(s, axis=-1, keepdims=True))
        alpha = jnp.exp(m_prev - m_new)
        p = jnp.exp(s - m_new)
        l_ref[...] = alpha * l_ref[...] + jnp.sum(p, axis=-1, keepdims=True)
        acc_ref[...] = alpha * acc_ref[...] + jnp.einsum(
            'hqk,hkd->hqd', p.astype(v.dtype), v,
            preferred_element_type=jnp.float32)
        m_ref[...] = m_new

    if causal:
        # Below-diagonal tiles: unmasked.  Diagonal tile: masked.  Above-diagonal
        # tiles: compute skipped entirely (their k/v DMA is also elided, since the
        # clamped index map repeats the previous block index).
        pl.when(ki < qi)(lambda: _compute(False))
        pl.when(ki == qi)(lambda: _compute(True))
    else:
        _compute(False)

    @pl.when(ki == pl.num_programs(2) - 1)
    def _finalize():
        o = acc_ref[...] * pl.reciprocal(l_ref[...], approx=True)    # (H, tq, Dh)
        for h in range(n_heads):    # write a lane-dense (tq, H*Dh) output slab
            o_ref[0, :, h * d_head:(h + 1) * d_head] = o[h].astype(o_ref.dtype)


def pallas_flash_attention(qkv_t, *, causal, n_valid, tile_target=256):
    """qkv_t: (3, B, H, N, Dh), q/k pre-normalized.  Returns (B, N, H*Dh)."""
    three, B, H, N, Dh = qkv_t.shape
    assert three == 3
    D = H * Dh
    tile = _pick_tile(N, tile_target, 128) if N >= 128 else N
    tq = tkv = tile
    mask_kv = (not causal) and (n_valid != N)

    if causal:
        k_idx = lambda b, qi, ki: (1, b, 0, jnp.minimum(ki, qi), 0)
        v_idx = lambda b, qi, ki: (2, b, 0, jnp.minimum(ki, qi), 0)
    else:
        k_idx = lambda b, qi, ki: (1, b, 0, ki, 0)
        v_idx = lambda b, qi, ki: (2, b, 0, ki, 0)

    kernel = functools.partial(_flash_attn_kernel, causal=causal, tq=tq, tkv=tkv,
                               n_heads=H, d_head=Dh, kv_valid=n_valid,
                               mask_kv=mask_kv)
    return pl.pallas_call(
        kernel,
        out_shape=jax.ShapeDtypeStruct((B, N, D), qkv_t.dtype),
        grid=(B, N // tq, N // tkv),
        in_specs=[pl.BlockSpec((1, 1, H, tq, Dh), lambda b, qi, ki: (0, b, 0, qi, 0)),
                  pl.BlockSpec((1, 1, H, tkv, Dh), k_idx),
                  pl.BlockSpec((1, 1, H, tkv, Dh), v_idx)],
        out_specs=pl.BlockSpec((1, tq, D), lambda b, qi, ki: (b, qi, 0)),
        scratch_shapes=[pltpu.VMEM((H, tq, 1), jnp.float32),    # running max m
                        pltpu.VMEM((H, tq, 1), jnp.float32),    # running sum l
                        pltpu.VMEM((H, tq, Dh), jnp.float32)],  # output accumulator
        compiler_params=pltpu.CompilerParams(
            dimension_semantics=("parallel", "parallel", "arbitrary"),
            vmem_limit_bytes=_VMEM_LIMIT),
    )(qkv_t, qkv_t, qkv_t)


# ---------------------------------------------------------------------------
# Module wrapper (parameters + glue reshapes, no XLA transposes)
# ---------------------------------------------------------------------------
class AttnParams:
    def __init__(self, key, d_model, n_heads, dtype=jnp.float32):
        self.d_model = d_model
        self.n_heads = n_heads
        self.d_head = d_model // n_heads
        k1, k2 = jax.random.split(key, 2)
        bound = 1.0 / math.sqrt(d_model)   # nn.Linear default init range
        # Stored pre-transposed in (in, out) layout: no .T at call time.
        self.w_qkv = jax.random.uniform(k1, (d_model, 3 * d_model), dtype, -bound, bound)
        self.w_out = jax.random.uniform(k2, (d_model, d_model), dtype, -bound, bound)
        # QKNorm RMSNorm weights (ones, nn.RMSNorm default), kept in f32.
        self.q_norm_w = jnp.ones((1, self.d_head), jnp.float32)
        self.k_norm_w = jnp.ones((1, self.d_head), jnp.float32)
        # TODO(synk): mimetic_init is a weight-initialization scheme only;
        # synthetic uniform init is used here instead.


def attn_forward(params: AttnParams, x, *, causal=True):
    B, N, D = x.shape
    H, Dh = params.n_heads, params.d_head

    # Pad the sequence to a multiple of 128 so attention tiles stay lane/VMEM
    # friendly (padded kv columns are masked / causally excluded; padded rows
    # are sliced off at the end).
    Np = N if N < 128 else ((N + 127) // 128) * 128
    xp = x if Np == N else jnp.pad(x, ((0, 0), (0, Np - N), (0, 0)))

    # 1) qkv projection (tiled Pallas matmul)
    qkv = pallas_matmul(xp.reshape(B * Np, D), params.w_qkv)        # (B*Np, 3D)

    # 2) QKNorm + rearrange 'b n (three h d) -> three b h n d' in one Pallas pass
    qkv5 = qkv.reshape(B, Np, 3, H, Dh)                             # free reshape
    qkv_t = pallas_qknorm_rearrange(qkv5, params.q_norm_w, params.k_norm_w)

    # 3) flash attention -> lane-dense (B, Np, D)
    o = pallas_flash_attention(qkv_t, causal=causal, n_valid=N)

    # 4) out projection (tiled Pallas matmul), no output-side rearrange needed
    out = pallas_matmul(o.reshape(B * Np, D), params.w_out).reshape(B, Np, D)
    return out if Np == N else out[:, :N]


# ---------------------------------------------------------------------------
# Pure-JAX (f32) reference for verification
# ---------------------------------------------------------------------------
def attn_reference(params: AttnParams, x, *, causal=True, eps=1e-6):
    B, N, D = x.shape
    H, Dh = params.n_heads, params.d_head
    w_qkv = params.w_qkv.astype(jnp.float32)
    w_out = params.w_out.astype(jnp.float32)
    qkv = x @ w_qkv
    qkv = qkv.reshape(B, N, 3, H, Dh).transpose(2, 0, 3, 1, 4)
    q, k, v = qkv[0], qkv[1], qkv[2]

    def rms(t, w):
        return t * lax.rsqrt(jnp.mean(t * t, -1, keepdims=True) + eps) * w

    q = rms(q, params.q_norm_w.reshape(Dh))
    k = rms(k, params.k_norm_w.reshape(Dh))
    s = jnp.einsum("bhqd,bhkd->bhqk", q, k) / math.sqrt(Dh)
    if causal:
        mask = jnp.tril(jnp.ones((N, N), bool))
        s = jnp.where(mask, s, -1e30)
    p = jax.nn.softmax(s, axis=-1)
    o = jnp.einsum("bhqk,bhkd->bhqd", p, v)
    o = o.transpose(0, 2, 1, 3).reshape(B, N, D)
    return o @ w_out


# ---------------------------------------------------------------------------
if __name__ == "__main__":
    def check(B, N, D, H, causal, dtype=jnp.float32, tol=2e-3):
        kx, kp = jax.random.split(jax.random.PRNGKey(0))
        x = jax.random.normal(kx, (B, N, D), jnp.float32)
        params = AttnParams(kp, D, H, dtype=dtype)
        out = jax.block_until_ready(attn_forward(params, x.astype(dtype), causal=causal))
        assert out.shape == (B, N, D)
        ref = attn_reference(params, x, causal=causal)
        err = float(jnp.max(jnp.abs(out.astype(jnp.float32) - ref)))
        assert err < tol, (
            f"max abs err {err} (B={B}, N={N}, D={D}, H={H}, causal={causal}, dtype={dtype})")

    # Small shapes consistent with the module: batch=2, seq=8, d_model=32, heads=4.
    check(2, 8, 32, 4, causal=True)
    check(2, 8, 32, 4, causal=False)
    # Multi-tile path: exercises online-softmax kv reduction + the three causal
    # tile classes (skipped / diagonal / fully-visible) + the k/v DMA clamp.
    check(1, 512, 16, 2, causal=True)
    # Non-multiple-of-128 sequence: exercises the padding + kv-validity mask.
    check(1, 200, 16, 2, causal=False)
    # bf16 path: MXU fed bf16 operands with f32 accumulation.
    check(2, 8, 32, 4, causal=True, dtype=jnp.bfloat16, tol=1.5e-1)

    print("KERNEL_OK")
</pallas_src>

<mosaic_0001>
module attributes {stable_mosaic.version = 11 : i64} {
  func.func @_matmul_single_kernel(%arg0: i32, %arg1: i32, %arg2: memref<16x32xf32, #tpu.memory_space<vmem>>, %arg3: memref<32x96xf32, #tpu.memory_space<vmem>>, %arg4: memref<16x96xf32, #tpu.memory_space<vmem>>) attributes {dimension_semantics = [#tpu.dimension_semantics<parallel>, #tpu.dimension_semantics<parallel>], iteration_bounds = array<i64: 1, 1>, scalar_prefetch = 0 : i64, scratch_operands = 0 : i64, tpu.core_type = #tpu.core_type<tc>, window_params = [{transform_indices = @transform_0, window_bounds = array<i64: 16, 32>}, {transform_indices = @transform_1, window_bounds = array<i64: 32, 96>}, {transform_indices = @transform_2, window_bounds = array<i64: 16, 96>}]} {
    %c0 = arith.constant 0 : index
    %c0_0 = arith.constant 0 : index
    %0 = vector.load %arg2[%c0, %c0_0] : memref<16x32xf32, #tpu.memory_space<vmem>>, vector<16x32xf32>
    %c0_1 = arith.constant 0 : index
    %c0_2 = arith.constant 0 : index
    %1 = vector.load %arg3[%c0_1, %c0_2] : memref<32x96xf32, #tpu.memory_space<vmem>>, vector<32x96xf32>
    %cst = arith.constant dense<0.000000e+00> : vector<16x96xf32>
    %2 = tpu.matmul %0, %1, %cst {dimension_numbers = #tpu.dot_dimension_numbers<[1], [0], [0], [1], [0, 0, 1, 1], [], []>} : vector<16x32xf32>, vector<32x96xf32>, vector<16x96xf32> -> vector<16x96xf32>
    %c0_3 = arith.constant 0 : index
    %c0_4 = arith.constant 0 : index
    %3 = vector.load %arg4[%c0_3, %c0_4] : memref<16x96xf32, #tpu.memory_space<vmem>>, vector<16x96xf32>
    tpu.vector_store %arg4[%c0_3, %c0_4], %2 {strides = array<i32>} : memref<16x96xf32, #tpu.memory_space<vmem>>, vector<16x96xf32>,
    return
  }
  func.func @transform_0(%arg0: i32, %arg1: i32) -> (i32, i32) {
    %c0_i32 = arith.constant 0 : i32
    %c0_i32_0 = arith.constant 0 : i32
    return %arg0, %c0_i32 : i32, i32
  }
  func.func @transform_1(%arg0: i32, %arg1: i32) -> (i32, i32) {
    %c0_i32 = arith.constant 0 : i32
    %c0_i32_0 = arith.constant 0 : i32
    return %c0_i32, %arg1 : i32, i32
  }
  func.func @transform_2(%arg0: i32, %arg1: i32) -> (i32, i32) {
    %c0_i32 = arith.constant 0 : i32
    return %arg0, %arg1 : i32, i32
  }
}

</mosaic_0001>

<llo_original>
// kernel: tpu_custom_call.1
$region0: #{tpu_custom_call.1}
  #allocation0 [shape = 'u32[]', space=smem, size = 0x4, offset = 0x4, fixed_abs, tag = 'smem constant byte address 0x4 - core index']
  #allocation1 [shape = 'u32[144,128]{1,0:T(1,128)}', space=vmem, size = 0x12000, scoped, tag = 'internal scratch']
  %s0 = inlined_call_operand.hbm [shape: f32[16,32], index: 0, kind: input, shape index: {}]
  %s1 = inlined_call_operand.hbm [shape: f32[32,96], index: 1, kind: input, shape index: {}]
  %s2 = inlined_call_operand.hbm [shape: f32[16,96], index: 2, kind: output, shape index: {}]
  %s3 = sld [smem:[#allocation0]]
  $region26: #{tpu_custom_call.1} parent=0
    _
  %s5 = ssub.s32 1, %s3
  %s6 = scalar_select 0, %s5, %s3
  $region1: #{tpu_custom_call.1} parent=0
    #allocation2 [shape = 'u8[8192]{0}', space=vmem, size = 0x2000, scoped, tag = 'input window, operand 0, single buffered']
    #allocation3 [shape = 's32[1]{0}', space=sflag, size = 0x4, scoped, tag = 'scoped memory for tpu_custom_call.1']
    #allocation4 [shape = 's32[1]{0}', space=sflag, size = 0x4, scoped, tag = 'scoped memory for tpu_custom_call.1']
    #allocation5 [shape = 'u8[16384]{0}', space=vmem, size = 0x4000, scoped, tag = 'input window, operand 1, single buffered']
    #allocation6 [shape = 's32[1]{0}', space=sflag, size = 0x4, scoped, tag = 'scoped memory for tpu_custom_call.1']
    #allocation7 [shape = 'u8[8192]{0}', space=vmem, size = 0x2000, scoped, tag = 'output window, operand 0, single buffered']
    %7 = vsyncpa [#allocation3], 0
    %8 = vsyncpa [#allocation6], 0
    %9 = vsyncpa [#allocation4], 0
    // Predicated region
    $region2: #{tpu_custom_call.1} parent=1 // pred_check
      _
    $region3: #{tpu_custom_call.1} parent=1 // pred_check_branch
      %11 = sbr.rel (0) target = $region5
    $region4: #{tpu_custom_call.1} parent=1 // pred_region
      %s13 = ssub.s32 256, 256
      %14 = vsyncadd [#allocation3], %s13
      %s15 = sshll.u32 [#allocation2], 4
      %s16 = int_to_ptr.vmem [resolvable:$true] %s15
      %21 = dma.hbm_to_vmem [thread:$0]  %s0, 256, %s16, [#allocation3], 128, 128, 8
    $region5: #{tpu_custom_call.1} parent=1 // pred_fallthru
      _
    // Predicated region
    $region6: #{tpu_custom_call.1} parent=1 // pred_check
      _
    $region7: #{tpu_custom_call.1} parent=1 // pred_check_branch
      %23 = sbr.rel (0) target = $region9
    $region8: #{tpu_custom_call.1} parent=1 // pred_region
      %s25 = ssub.s32 512, 512
      %26 = vsyncadd [#allocation6], %s25
      %s27 = sshll.u32 [#allocation5], 4
      %s28 = int_to_ptr.vmem [resolvable:$true] %s27
      %33 = dma.hbm_to_vmem [thread:$0]  %s1, 512, %s28, [#allocation6], 128, 128, 8
    $region9: #{tpu_custom_call.1} parent=1 // pred_fallthru
      _
    // Predicated region
    $region10: #{tpu_custom_call.1} parent=1 // pred_check
      _
    $region11: #{tpu_custom_call.1} parent=1 // pred_check_branch
      %35 = sbr.rel (0) target = $region13
    $region12: #{tpu_custom_call.1} parent=1 // pred_region
      %36 = dma.done [#allocation3], 256
    $region13: #{tpu_custom_call.1} parent=1 // pred_fallthru
      _
    // Predicated region
    $region14: #{tpu_custom_call.1} parent=1 // pred_check
      _
    $region15: #{tpu_custom_call.1} parent=1 // pred_check_branch
      %38 = sbr.rel (0) target = $region17
    $region16: #{tpu_custom_call.1} parent=1 // pred_region
      %39 = dma.done [#allocation6], 512
    $region17: #{tpu_custom_call.1} parent=1 // pred_fallthru
      _
    %v40 = vld [vmem:[#allocation2] sm:$0xff]
    %v41 = vld [vmem:[#allocation2 + $0x8] sm:$0xff]
    %v42 = vld [vmem:[#allocation5] sm:$0xff]
    %v43 = vld [vmem:[#allocation5 + $0x8] sm:$0xff]
    %v44 = vld [vmem:[#allocation5 + $0x10] sm:$0xff]
    %v45 = vld [vmem:[#allocation5 + $0x18] sm:$0xff]
    %vm46 = vcmask 261120
    %v48 = vsel %vm46, %v40, 0
    %v51 = vsel %vm46, %v41, 0
    %53 = vmatprep.subr.mxu0 0.0
    %54 = vmatpush1.msra.mxu0 %v42
    %55 = vmatprep.subr.mxu0 0.0
    %56 = vmatpush1.msra.mxu0 %v43
    %57 = vmatprep.subr.mxu0 0.0
    %58 = vmatpush1.msra.mxu0 %v44
    %59 = vmatprep.subr.mxu0 0.0
    %60 = vmatpush1.msra.mxu0 %v45
    %61 = vmatprep.subr.mxu0 0.0
    %62 = vmatpush1.msra.mxu0 0.0
    %63 = vmatprep.subr.mxu0 0.0
    %64 = vmatpush1.msra.mxu0 0.0
    %65 = vmatprep.subr.mxu0 0.0
    %66 = vmatpush1.msra.mxu0 0.0
    %67 = vmatprep.subr.mxu0 0.0
    %68 = vmatpush1.msra.mxu0 0.0
    %69 = vmatprep.subr.mxu0 0.0
    %70 = vmatpush1.msra.mxu0 0.0
    %71 = vmatprep.subr.mxu0 0.0
    %72 = vmatpush1.msra.mxu0 0.0
    %73 = vmatprep.subr.mxu0 0.0
    %74 = vmatpush1.msra.mxu0 0.0
    %75 = vmatprep.subr.mxu0 0.0
    %76 = vmatpush1.msra.mxu0 0.0
    %77 = vmatprep.subr.mxu0 0.0
    %78 = vmatpush1.msra.mxu0 0.0
    %79 = vmatprep.subr.mxu0 0.0
    %80 = vmatpush1.msra.mxu0 0.0
    %81 = vmatprep.subr.mxu0 0.0
    %82 = vmatpush1.msra.mxu0 0.0
    %83 = vmatprep.subr.mxu0 0.0
    %84 = vmatpush1.msra.mxu0 0.0
    %85 = vmatprep.subr.mxu0 0.0
    %86 = vmatpush1.msra.mxu0 0.0
    %87 = vmatprep.subr.mxu0 0.0
    %88 = vmatpush1.msra.mxu0 0.0
    %89 = vmatprep.subr.mxu0 0.0
    %90 = vmatpush1.msra.mxu0 0.0
    %91 = vmatprep.subr.mxu0 0.0
    %92 = vmatpush1.msra.mxu0 0.0
    %93 = vmatprep.subr.mxu0 0.0
    %94 = vmatpush1.msra.mxu0 0.0
    %95 = vmatprep.subr.mxu0 0.0
    %96 = vmatpush1.msra.mxu0 0.0
    %97 = vmatprep.subr.mxu0 0.0
    %98 = vmatpush1.msra.mxu0 0.0
    %99 = vmatprep.subr.mxu0 0.0
    %100 = vmatpush1.msra.mxu0 0.0
    %101 = vmatprep.subr.mxu0 0.0
    %102 = vmatpush1.msra.mxu0 0.0
    %103 = vmatprep.subr.mxu0 0.0
    %104 = vmatpush1.msra.mxu0 0.0
    %105 = vmatprep.subr.mxu0 0.0
    %106 = vmatpush1.msra.mxu0 0.0
    %107 = vmatprep.subr.mxu0 0.0
    %108 = vmatpush1.msra.mxu0 0.0
    %109 = vmatprep.subr.mxu0 0.0
    %110 = vmatpush1.msra.mxu0 0.0
    %111 = vmatprep.subr.mxu0 0.0
    %112 = vmatpush1.msra.mxu0 0.0
    %113 = vmatprep.subr.mxu0 0.0
    %114 = vmatpush1.msra.mxu0 0.0
    %115 = vmatprep.subr.mxu0 0.0
    %116 = vmatpush1.msra.mxu0 0.0
    %117 = vmatprep.mubr.f32.mxu0 0.0
    %118 = vmatmul.mubr.f32.gmra.mrb[0].mxu0 %v48
    %v119 = vpop.f32.mrb[0].mxu0
    %v120 = vadd.f32 0.0, %v119
    %v121 = vpop.f32.mrb[0].mxu0
    %122 = vmatprep.mubr.f32.mxu0 0.0
    %123 = vmatmul.mubr.f32.gmra.mrb[0].mxu0 %v51
    %v124 = vpop.f32.mrb[0].mxu0
    %v125 = vadd.f32 0.0, %v124
    %v126 = vpop.f32.mrb[0].mxu0
    %127 = vdwg.mxu0
    %vm128 = vcmask 785408
    %129 = vst.msk [vmem:[#allocation7] sm:$0xff] %vm128, %v120
    %130 = vst.msk [vmem:[#allocation7 + $0x8] sm:$0xff] %vm128, %v125
    // Predicated region
    $region18: #{tpu_custom_call.1} parent=1 // pred_check
      _
    $region19: #{tpu_custom_call.1} parent=1 // pred_check_branch
      %132 = sbr.rel (0) target = $region21
    $region20: #{tpu_custom_call.1} parent=1 // pred_region
      %s134 = ssub.s32 256, 256
      %135 = vsyncadd [#allocation4], %s134
      %s136 = sshll.u32 [#allocation7], 4
      %s137 = int_to_ptr.vmem [resolvable:$true] %s136
      %142 = dma.vmem_to_hbm [thread:$0]  %s137, 256, %s2, [#allocation4], 128, 128, 8
    $region21: #{tpu_custom_call.1} parent=1 // pred_fallthru
      _
    // Predicated region
    $region22: #{tpu_custom_call.1} parent=1 // pred_check
      _
    $region23: #{tpu_custom_call.1} parent=1 // pred_check_branch
      %144 = sbr.rel (0) target = $region25
    $region24: #{tpu_custom_call.1} parent=1 // pred_region
      %145 = dma.done [#allocation4], 256
    $region25: #{tpu_custom_call.1} parent=1 // pred_fallthru
      _
    %146 = vsyncpa [#allocation3], 1
    %147 = vsyncpa [#allocation6], 1
    %148 = vsyncpa [#allocation4], 1

</llo_original>
